<compile_context>
chip_gen: v7x
topology: tpu7x:2x2x1
jax: 0.10.0
libtpu: 0.0.40
codegen_flags: <defaults>
</compile_context>

<pallas_src>
import functools

import jax
import jax.numpy as jnp
from jax.experimental import pallas as pl
from jax.experimental.pallas import tpu as pltpu


# ----------------------------------------------------------------------------
# Helpers
# ----------------------------------------------------------------------------
def _cdiv(a, b):
    return -(-a // b)


def _choose_tile_k(c, hw, itemsize, budget_bytes=8 << 20):
    """K tile: multiple of 128, ~budget_bytes per in-flight VMEM buffer."""
    cand = budget_bytes // max(1, c * itemsize)
    cand = max(128, (cand // 128) * 128)
    # If the whole row fits, use the full (possibly non-128-aligned) extent:
    # a block equal to the full dim needs no alignment and no masking.
    return hw if cand >= hw else cand


_GRAM_DNUMS = (((1,), (1,)), ((), ()))  # contract the last (lane) dim of both


# ----------------------------------------------------------------------------
# Kernel: per-core partial Gram, accumulated directly into the output block
# ----------------------------------------------------------------------------
def _gram_partial_kernel(x_ref, out_ref, *, tk, hw, nkh, need_mask, compute_dtype):
    k = pl.program_id(1)

    @pl.when(k == 0)
    def _():
        out_ref[...] = jnp.zeros_like(out_ref)

    x = x_ref[...]  # (C, tk) tile in the input's native dtype
    if need_mask:
        # Logical (unclamped) global K-tile index for this step; zero out
        # lanes past the true H*W extent (covers the ragged last tile and the
        # duplicated/clamped remainder tile of the core split).
        tile = pl.program_id(0) * nkh + k
        limit = hw - tile * tk
        lane = jax.lax.broadcasted_iota(jnp.int32, x.shape, 1)
        x = jnp.where(lane < limit, x, 0)
    x = x.astype(compute_dtype)  # in-kernel cast (VPU, hidden under DMA/MXU)
    out_ref[0] += jax.lax.dot_general(
        x, x, dimension_numbers=_GRAM_DNUMS, preferred_element_type=jnp.float32
    )


# ----------------------------------------------------------------------------
# pallas_call plumbing
# ----------------------------------------------------------------------------
def _gram_partials(x_flat, compute_dtype, tile_k):
    c, hw = x_flat.shape
    itemsize = jnp.dtype(x_flat.dtype).itemsize
    if tile_k is None:
        tk = _choose_tile_k(c, hw, itemsize)
    else:
        tk = tile_k if tile_k < hw else hw  # tile_k must be a multiple of 128

    nk = _cdiv(hw, tk)                 # total K tiles
    ncores = 2 if nk >= 2 else 1       # v7x has 2 TCs; extra axis is a no-op on 1-TC chips
    nkh = _cdiv(nk, ncores)            # K tiles per core
    need_clamp = ncores * nkh > nk     # odd tile count: core 1 has one padding step
    need_mask = need_clamp or (hw % tk != 0)

    if need_clamp:
        x_index_map = lambda i, k: (0, jnp.minimum(i * nkh + k, nk - 1))
    else:
        x_index_map = lambda i, k: (0, i * nkh + k)

    # Per-core VMEM: 2x double-buffered x tile + (possibly double-buffered)
    # resident (1, C, C) f32 output + margin.  <= ~20 MiB for realistic C,
    # well under v7x's 64 MiB / the 48 MiB target from the review.
    vmem_need = 2 * c * tk * itemsize + 2 * c * c * 4 + (2 << 20)

    return pl.pallas_call(
        functools.partial(
            _gram_partial_kernel,
            tk=tk, hw=hw, nkh=nkh, need_mask=need_mask, compute_dtype=compute_dtype,
        ),
        out_shape=jax.ShapeDtypeStruct((ncores, c, c), jnp.float32),
        grid=(ncores, nkh),
        in_specs=[pl.BlockSpec((c, tk), x_index_map)],
        out_specs=pl.BlockSpec((1, c, c), lambda i, k: (i, 0, 0)),
        compiler_params=pltpu.CompilerParams(
            dimension_semantics=("parallel", "arbitrary"),
            vmem_limit_bytes=int(max(vmem_need, 32 << 20)),
        ),
        cost_estimate=pl.CostEstimate(
            flops=2 * c * c * hw,
            transcendentals=0,
            bytes_accessed=c * hw * itemsize + ncores * c * c * 4,
        ),
    )(x_flat)


def _gram(x, compute_dtype, tile_k):
    b, c, h, w = x.shape
    if b != 1:
        raise ValueError("PyTorch view(C, H*W) semantics require batch size 1")
    x_flat = x.reshape(c, h * w)  # free view under jit: no copy, no pad, no cast
    partials = _gram_partials(x_flat, compute_dtype, tile_k)
    # Tiny (C, C) epilogue: combine the per-core partials and apply 1/nelement.
    return partials.sum(axis=0) * (1.0 / x.size)


@functools.partial(jax.jit, static_argnames=("compute_dtype", "tile_k"))
def gram_matrix(x, compute_dtype=jnp.bfloat16, tile_k=None):
    """G = (X @ X.T) / x.nelement() for x of shape (1, C, H, W)."""
    return _gram(x, compute_dtype, tile_k)


@functools.partial(jax.jit, static_argnames=("compute_dtype", "tile_k"))
def gram_and_loss(x, target, strength, compute_dtype=jnp.bfloat16, tile_k=None):
    """Returns (G, strength * MSE(G, target))."""
    g = _gram(x, compute_dtype, tile_k)
    diff = g - target.astype(jnp.float32)
    loss = strength * jnp.mean(diff * diff)  # tiny (C,C) reduction: plain XLA
    return g, loss


# ----------------------------------------------------------------------------
# StyleLoss module equivalent (forward semantics of the PyTorch module)
# ----------------------------------------------------------------------------
class StyleLossPallas:
    def __init__(self, strength, normalize, compute_dtype=jnp.bfloat16):
        self.target = None
        self.strength = strength
        self.mode = "None"
        self.blend_weight = None
        self.normalize = normalize  # only affects backward (ScaleGradients)
        self.compute_dtype = compute_dtype
        self.G = None
        self.loss = None

    def __call__(self, x):
        if self.mode == "loss":
            self.G, self.loss = gram_and_loss(
                x, self.target, self.strength, compute_dtype=self.compute_dtype
            )
        else:
            # 'capture' and 'None' both compute G / nelement (as in PyTorch).
            self.G = gram_matrix(x, compute_dtype=self.compute_dtype)
            if self.mode == "capture":
                if self.blend_weight is None:
                    self.target = self.G
                elif self.target is None or self.target.size == 0:
                    self.target = self.G * self.blend_weight
                else:
                    self.target = self.target + self.blend_weight * self.G
        return x  # forward returns input unchanged


# ----------------------------------------------------------------------------
# Demo / smoke test
# ----------------------------------------------------------------------------
if __name__ == "__main__":
    key = jax.random.PRNGKey(0)
    k1, k2, k3 = jax.random.split(key, 3)

    B, C, H, W = 1, 8, 16, 16  # B must be 1 (view(C, H*W) semantics)
    x_style = jax.random.normal(k1, (B, C, H, W), dtype=jnp.float32)
    x_input = jax.random.normal(k2, (B, C, H, W), dtype=jnp.float32)

    def ref_gram(x, dt):
        c = x.shape[1]
        xf = x.reshape(c, -1).astype(dt)
        g = jax.lax.dot_general(xf, xf, dimension_numbers=_GRAM_DNUMS,
                                preferred_element_type=jnp.float32)
        return g / x.size

    # ---- default bf16-MXU path (f32 accumulation) --------------------------
    mod = StyleLossPallas(strength=0.5, normalize=True)
    mod.mode = "capture"
    mod(x_style)
    mod.mode = "loss"
    out = mod(x_input)
    jax.block_until_ready(out)
    jax.block_until_ready(mod.loss)

    g_tgt = ref_gram(x_style, jnp.bfloat16)
    g_in = ref_gram(x_input, jnp.bfloat16)
    ref_loss = 0.5 * jnp.mean((g_in - g_tgt) ** 2)
    assert jnp.allclose(mod.target, g_tgt, rtol=1e-3, atol=1e-5)
    assert jnp.allclose(mod.G, g_in, rtol=1e-3, atol=1e-5)
    assert jnp.allclose(mod.loss, ref_loss, rtol=1e-2, atol=1e-8)
    assert jnp.allclose(out, x_input)

    # ---- float32 parity path (matches the f32 PyTorch StyleLoss) ----------
    mod32 = StyleLossPallas(strength=0.5, normalize=True, compute_dtype=jnp.float32)
    mod32.mode = "capture"
    mod32(x_style)
    mod32.mode = "loss"
    mod32(x_input)
    jax.block_until_ready(mod32.loss)
    g32_in = ref_gram(x_input, jnp.float32)
    g32_tgt = ref_gram(x_style, jnp.float32)
    ref32_loss = 0.5 * jnp.mean((g32_in - g32_tgt) ** 2)
    assert jnp.allclose(mod32.G, g32_in, rtol=1e-2, atol=1e-3)
    assert jnp.allclose(mod32.loss, ref32_loss, rtol=5e-2, atol=1e-6)

    # ---- multi-tile / ragged-K / 2-partial core-split path ----------------
    x_rag = jax.random.normal(k3, (1, 8, 17, 17), dtype=jnp.float32)  # H*W = 289
    g_rag = jax.block_until_ready(
        gram_matrix(x_rag, compute_dtype=jnp.float32, tile_k=128)
    )
    assert jnp.allclose(g_rag, ref_gram(x_rag, jnp.float32), rtol=1e-2, atol=1e-3)

    print("KERNEL_OK")
</pallas_src>

<mosaic_0001>
module attributes {stable_mosaic.version = 11 : i64} {
  func.func @_gram_partial_kernel(%arg0: i32, %arg1: i32, %arg2: memref<8x256xf32, #tpu.memory_space<vmem>>, %arg3: memref<1x8x8xf32, #tpu.memory_space<vmem>>) attributes {dimension_semantics = [#tpu.dimension_semantics<parallel>, #tpu.dimension_semantics<arbitrary>], iteration_bounds = array<i64: 1, 1>, scalar_prefetch = 0 : i64, scratch_operands = 0 : i64, tpu.core_type = #tpu.core_type<tc>, window_params = [{transform_indices = @transform_0, window_bounds = array<i64: 8, 256>}, {transform_indices = @transform_1, window_bounds = array<i64: 1, 8, 8>}]} {
    %c0_i32 = arith.constant 0 : i32
    %0 = arith.cmpi eq, %arg1, %c0_i32 : i32
    %1 = arith.extui %0 : i1 to i32
    %c0_i32_0 = arith.constant 0 : i32
    %2 = arith.cmpi ne, %1, %c0_i32_0 : i32
    scf.if %2 {
      %cst_8 = arith.constant 0.000000e+00 : f32
      %12 = vector.broadcast %cst_8 : f32 to vector<1x8x8xf32>
      %c0_9 = arith.constant 0 : index
      %c0_10 = arith.constant 0 : index
      %c0_11 = arith.constant 0 : index
      %13 = vector.load %arg3[%c0_9, %c0_10, %c0_11] : memref<1x8x8xf32, #tpu.memory_space<vmem>>, vector<1x8x8xf32>
      tpu.vector_store %arg3[%c0_9, %c0_10, %c0_11], %12 {strides = array<i32>} : memref<1x8x8xf32, #tpu.memory_space<vmem>>, vector<1x8x8xf32>,
    } else {
    }
    %c0 = arith.constant 0 : index
    %c0_1 = arith.constant 0 : index
    %3 = vector.load %arg2[%c0, %c0_1] : memref<8x256xf32, #tpu.memory_space<vmem>>, vector<8x256xf32>
    %4 = arith.truncf %3 : vector<8x256xf32> to vector<8x256xbf16>
    %c0_2 = arith.constant 0 : index
    %c0_3 = arith.constant 0 : index
    %c0_4 = arith.constant 0 : index
    %5 = vector.load %arg3[%c0_2, %c0_3, %c0_4] : memref<1x8x8xf32, #tpu.memory_space<vmem>>, vector<1x8x8xf32>
    %6 = vector.shape_cast %5 : vector<1x8x8xf32> to vector<8x8xf32>
    %cst = arith.constant dense<0.000000e+00> : vector<8x8xf32>
    %7 = tpu.matmul %4, %4, %cst {dimension_numbers = #tpu.dot_dimension_numbers<[1], [1], [0], [0], [0, 0, 1, 0], [], []>} : vector<8x256xbf16>, vector<8x256xbf16>, vector<8x8xf32> -> vector<8x8xf32>
    %8 = arith.addf %6, %7 : vector<8x8xf32>
    %c0_5 = arith.constant 0 : index
    %c0_6 = arith.constant 0 : index
    %c0_7 = arith.constant 0 : index
    %9 = vector.load %arg3[%c0_5, %c0_6, %c0_7] : memref<1x8x8xf32, #tpu.memory_space<vmem>>, vector<1x8x8xf32>
    %10 = vector.shape_cast %9 : vector<1x8x8xf32> to vector<8x8xf32>
    %11 = vector.shape_cast %8 : vector<8x8xf32> to vector<1x8x8xf32>
    tpu.vector_store %arg3[%c0_5, %c0_6, %c0_7], %11 {strides = array<i32>} : memref<1x8x8xf32, #tpu.memory_space<vmem>>, vector<1x8x8xf32>,
    return
  }
  func.func @transform_0(%arg0: i32, %arg1: i32) -> (i32, i32) {
    %c1_i32 = arith.constant 1 : i32
    %0 = arith.muli %arg0, %c1_i32 : i32
    %1 = arith.addi %0, %arg1 : i32
    %c0_i32 = arith.constant 0 : i32
    %c0_i32_0 = arith.constant 0 : i32
    return %c0_i32, %1 : i32, i32
  }
  func.func @transform_1(%arg0: i32, %arg1: i32) -> (i32, i32, i32) {
    %c0_i32 = arith.constant 0 : i32
    %c0_i32_0 = arith.constant 0 : i32
    %c0_i32_1 = arith.constant 0 : i32
    return %arg0, %c0_i32, %c0_i32_0 : i32, i32, i32
  }
}

</mosaic_0001>

<llo_original>
// kernel: gram_matrix.1
$region0: #{gram_matrix.1}
  #allocation0 [shape = 'u32[]', space=smem, size = 0x4, offset = 0x4, fixed_abs, tag = 'smem constant byte address 0x4 - core index']
  #allocation1 [shape = 'u32[144,128]{1,0:T(1,128)}', space=vmem, size = 0x12000, scoped, tag = 'internal scratch']
  %s0 = inlined_call_operand.vmem [shape: f32[8,256], index: 0, kind: input, shape index: {}]
  %s1 = inlined_call_operand.vmem [shape: f32[1,8,8], index: 1, kind: output, shape index: {}]
  %s2 = sld [smem:[#allocation0]]
  $region18: #{gram_matrix.1} parent=0
    _
  %s4 = ssub.s32 1, %s2
  %s5 = scalar_select 0, %s4, %s2
  // Predicated region
  $region2: #{gram_matrix.1} parent=0 // pred_check
    _
  $region3: #{gram_matrix.1} parent=0 // pred_check_branch
    %7 = sbr.rel (0) target = $region5
  $region4: #{gram_matrix.1} parent=0 // pred_region
    %s8 = sadd.s32 0, 0
    %s9 = smul.u32 2, %s8
    %p10 = scmp.lt.s32.totalorder %s9, 1
    %s11 = scalar_select %p10, %s9, 1
    %s12 = smul.addr %s11, 8
    %s13 = scalar_lea.vmem %s0, %s12
    %s14 = sadd.s32 0, 0
    %s15 = smul.u32 2, %s14
  $region5: #{gram_matrix.1} parent=0 // pred_fallthru
    _
  %s16 = sadd.s32 0, 0
  %s17 = smul.u32 2, %s16
  %p18 = scmp.lt.s32.totalorder %s17, 1
  %s19 = scalar_select %p18, %s17, 1
  %s20 = smul.addr %s19, 8
  %s21 = scalar_lea.vmem %s0, %s20
  %s22 = sadd.s32 0, 0
  %s23 = smul.u32 2, %s22
  %p24 = scmp.lt.s32.totalorder %s23, 1
  %s25 = scalar_select %p24, %s23, 1
  %s26 = smul.addr %s25, 8
  %s27 = scalar_lea.vmem %s0, %s26
  %s28 = sadd.s32 0, 0
  %s29 = smul.u32 2, %s28
  %p31 = scmp.eq.s32.totalorder 0, 0
  // Predicated region
  $region6: #{gram_matrix.1} parent=0 // pred_check
    %p32 = pneg %p31
  $region7: #{gram_matrix.1} parent=0 // pred_check_branch
    %34 = sbr.rel (%p32) target = $region9
  $region8: #{gram_matrix.1} parent=0 // pred_region
    %vm35 = vcmask 64512
    %36 = vst.msk [vmem:[%s1] sm:$0xff] %vm35, 0.0
  $region9: #{gram_matrix.1} parent=0 // pred_fallthru
    _
  %v37 = vld [vmem:[%s27] sm:$0xff]
  %v38 = vld [vmem:[%s27 + $0x8] sm:$0xff]
  %v39 = vpack.c.bf16 %v37, %v37
  %v40 = vpack.c.bf16 %v38, %v38
  %v41 = vld [vmem:[%s1] sm:$0xff]
  %42 = vmatprep.subr.bf16.mxu0 %v40
  %43 = vmatpush1.bf16.xpose.msra.mxu0 %v39
  %44 = vmatprep.subr.bf16.mxu0 0
  %45 = vmatpush1.bf16.xpose.msra.mxu0 0
  %46 = vmatprep.subr.bf16.mxu0 0
  %47 = vmatpush1.bf16.xpose.msra.mxu0 0
  %48 = vmatprep.subr.bf16.mxu0 0
  %49 = vmatpush1.bf16.xpose.msra.mxu0 0
  %50 = vmatprep.subr.bf16.mxu0 0
  %51 = vmatpush1.bf16.xpose.msra.mxu0 0
  %52 = vmatprep.subr.bf16.mxu0 0
  %53 = vmatpush1.bf16.xpose.msra.mxu0 0
  %54 = vmatprep.subr.bf16.mxu0 0
  %55 = vmatpush1.bf16.xpose.msra.mxu0 0
  %56 = vmatprep.subr.bf16.mxu0 0
  %57 = vmatpush1.bf16.xpose.msra.mxu0 0
  %58 = vmatprep.subr.bf16.mxu0 0
  %59 = vmatpush1.bf16.xpose.msra.mxu0 0
  %60 = vmatprep.subr.bf16.mxu0 0
  %61 = vmatpush1.bf16.xpose.msra.mxu0 0
  %62 = vmatprep.subr.bf16.mxu0 0
  %63 = vmatpush1.bf16.xpose.msra.mxu0 0
  %64 = vmatprep.subr.bf16.mxu0 0
  %65 = vmatpush1.bf16.xpose.msra.mxu0 0
  %66 = vmatprep.subr.bf16.mxu0 0
  %67 = vmatpush1.bf16.xpose.msra.mxu0 0
  %68 = vmatprep.subr.bf16.mxu0 0
  %69 = vmatpush1.bf16.xpose.msra.mxu0 0
  %70 = vmatprep.subr.bf16.mxu0 0
  %71 = vmatpush1.bf16.xpose.msra.mxu0 0
  %72 = vmatprep.subr.bf16.mxu0 0
  %73 = vmatpush1.bf16.xpose.msra.mxu0 0
  %74 = vmatprep.mubr.bf16.mxu0 %v40
  %75 = vmatmul.mubr.bf16.gmra.mrb[0].mxu0 %v39
  %v76 = vpop.f32.mrb[0].mxu0
  %v77 = vadd.f32 0.0, %v76
  %v78 = vpop.f32.mrb[0].mxu0
  %v79 = vpop.f32.mrb[0].mxu0
  %v80 = vpop.f32.mrb[0].mxu0
  %81 = vdwg.mxu0
  %v82 = vadd.f32 %v41, %v77
  %vm83 = vcmask 64512
  %84 = vst.msk [vmem:[%s1] sm:$0xff] %vm83, %v82
  // Predicated region
  $region10: #{gram_matrix.1} parent=0 // pred_check
    _
  $region11: #{gram_matrix.1} parent=0 // pred_check_branch
    %86 = sbr.rel (0) target = $region13
  $region12: #{gram_matrix.1} parent=0 // pred_region
    _
  $region13: #{gram_matrix.1} parent=0 // pred_fallthru
    _
  // Predicated region
  $region14: #{gram_matrix.1} parent=0 // pred_check
    _
  $region15: #{gram_matrix.1} parent=0 // pred_check_branch
    %88 = sbr.rel (0) target = $region17
  $region16: #{gram_matrix.1} parent=0 // pred_region
    _
  $region17: #{gram_matrix.1} parent=0 // pred_fallthru
    _

</llo_original>
